<compile_context>
chip_gen: v5e
topology: v5e:2x2
jax: 0.10.0
libtpu: 0.0.40
codegen_flags: <defaults>
</compile_context>

<pallas_src>
import functools

import jax
import jax.numpy as jnp
import numpy as np
from jax.experimental import pallas as pl
from jax.experimental.pallas import tpu as pltpu

_LN2 = 0.6931471805599453
_VMEM_BLOCK_BUDGET = 16 * 1024 * 1024   # target per-block VMEM footprint
_VMEM_LIMIT = 48 * 1024 * 1024          # raised scoped-VMEM limit (< v7x 64 MiB)


def _round_up(x, m):
    return ((x + m - 1) // m) * m


def _make_constants(mat_size):
    """Host-built 0/1 selector matrices, padded to sublane multiples of 8.

    For tril element k <-> (i, j) with j < i, k = i*(i-1)//2 + j:
      w[k]            = i + 1 - j        (constraint weight)
      A[k, k']        = 1 if k' = (i, l), l < j   (exclusive in-row prefix)
      S[i, k']        = 1 if k' = (i, l), l < i   (full in-row sum -> diagonal)
      Goff[i*M+j, k]  = 1                 (scatter off-diag into flat z)
      Gdiag[i*M+i, i] = 1                 (scatter diagonal into flat z)
    """
    M = mat_size
    T = M * (M - 1) // 2
    MM = M * M
    T8, M8, MM8 = _round_up(T, 8), _round_up(M, 8), _round_up(MM, 8)
    w = np.zeros((T8, 1), np.float32)
    A = np.zeros((T8, T8), np.float32)
    S = np.zeros((M8, T8), np.float32)
    Goff = np.zeros((MM8, T8), np.float32)
    Gdiag = np.zeros((MM8, M8), np.float32)
    for i in range(M):
        Gdiag[i * M + i, i] = 1.0
        for j in range(i):
            k = i * (i - 1) // 2 + j
            w[k, 0] = float(i + 1 - j)
            Goff[i * M + j, k] = 1.0
            S[i, k] = 1.0
            for l in range(j):
                A[k, i * (i - 1) // 2 + l] = 1.0
    return w, A, S, Goff, Gdiag


def _cholesky_lkj_kernel(w_ref, a_ref, s_ref, goff_ref, gdiag_ref, x_ref,
                         z_ref, c_ref):
    """One batch tile; batch on the lane axis. Fully vectorized (no row loops).

    w_ref     : [T8, 1]     constraint weights
    a_ref     : [T8, T8]    exclusive in-row prefix selector
    s_ref     : [M8, T8]    in-row sum selector
    goff_ref  : [MM8, T8]   off-diagonal scatter
    gdiag_ref : [MM8, M8]   diagonal scatter
    x_ref     : [T8, Bt]    unconstrained tril params (batch on lanes)
    z_ref     : [MM8, Bt]   flattened (row-major, padded) Cholesky factor
    c_ref     : [1, Bt]     per-batch-element constraint contribution
    """
    x = x_ref[...]                                       # [T8, Bt]
    ax = jnp.abs(x)
    # stable log(cosh(x)) = |x| + log(1 + exp(-2|x|)) - log 2  (no overflow)
    lc = ax + jnp.log(1.0 + jnp.exp(-2.0 * ax)) - _LN2   # [T8, Bt]
    th = jnp.tanh(x)                                      # [T8, Bt]

    # Per-batch constraint: one broadcast multiply + one cross-sublane reduce.
    c_ref[...] = -jnp.sum(w_ref[...] * lc, axis=0, keepdims=True)   # [1, Bt]

    dot = functools.partial(jnp.dot, preferred_element_type=jnp.float32,
                            precision=jax.lax.Precision.HIGHEST)
    p = dot(a_ref[...], lc)          # [T8, Bt] exclusive in-row prefix of lc
    r = dot(s_ref[...], lc)          # [M8, Bt] full in-row sums of lc
    z_off = th * jnp.exp(-p)         # off-diagonal entries (lane dense)
    z_diag = jnp.exp(-r)             # diagonal entries
    # Scatter into the flattened factor and write the whole tile at once.
    z_ref[...] = dot(goff_ref[...], z_off) + dot(gdiag_ref[...], z_diag)


def cholesky_lkj_forward(tril, mat_size, squeeze_batch=False,
                         tril_constraint=0.0,
                         vmem_block_budget=_VMEM_BLOCK_BUDGET):
    """Runs the Pallas kernel. tril: [B, T] -> (z [B,M,M] (or [M,M]), scalar)."""
    B, T = tril.shape
    M = mat_size
    assert T == M * (M - 1) // 2
    MM = M * M
    T8, M8, MM8 = _round_up(T, 8), _round_up(M, 8), _round_up(MM, 8)

    w, A, S, Goff, Gdiag = (jnp.asarray(c) for c in _make_constants(M))

    # ---- lane (batch) tile selection from a per-block VMEM budget ----------
    # bytes per lane: double-buffered in/out blocks + live intermediates.
    per_lane = 4 * (2 * (T8 + MM8 + 8) + 5 * T8 + 2 * M8 + MM8)
    lane_cap = max(128, (vmem_block_budget // per_lane) // 128 * 128)
    b128 = _round_up(B, 128)
    tile = min(b128, lane_cap)
    if b128 >= 256 and tile > b128 // 2:
        # keep >= 2 grid steps so the "parallel" batch axis can be sharded
        # across TensorCores (v7x megacore).
        tile = max(128, ((b128 // 2) // 128) * 128)
    b_pad = _round_up(B, tile)
    num_tiles = b_pad // tile

    # Batch -> lane axis; zero padding is exact (tanh(0)=0, logcosh(0)=0).
    tril_t = jnp.transpose(tril.astype(jnp.float32))           # [T, B]
    tril_t = jnp.pad(tril_t, ((0, T8 - T), (0, b_pad - B)))    # [T8, b_pad]

    def const_spec(shape):
        return pl.BlockSpec(shape, lambda b: (0, 0))

    z_t, c_vec = pl.pallas_call(
        _cholesky_lkj_kernel,
        out_shape=(
            jax.ShapeDtypeStruct((MM8, b_pad), jnp.float32),
            jax.ShapeDtypeStruct((1, b_pad), jnp.float32),
        ),
        grid=(num_tiles,),
        in_specs=[
            const_spec((T8, 1)),
            const_spec((T8, T8)),
            const_spec((M8, T8)),
            const_spec((MM8, T8)),
            const_spec((MM8, M8)),
            pl.BlockSpec((T8, tile), lambda b: (0, b)),
        ],
        out_specs=(
            pl.BlockSpec((MM8, tile), lambda b: (0, b)),
            pl.BlockSpec((1, tile), lambda b: (0, b)),
        ),
        compiler_params=pltpu.CompilerParams(
            dimension_semantics=("parallel",),
            vmem_limit_bytes=_VMEM_LIMIT),
    )(w, A, S, Goff, Gdiag, tril_t)

    z = jnp.transpose(z_t[:MM, :B]).reshape(B, M, M)
    if squeeze_batch:
        z = jnp.squeeze(z, axis=0)
    constraint = jnp.sum(c_vec[0, :B]) + tril_constraint
    return z, constraint


def _reference_forward(tril_np, mat_size):
    """Pure-numpy replica of the PyTorch forward (for verification)."""
    B = tril_np.shape[0]
    M = mat_size
    t = np.tanh(tril_np.astype(np.float64))
    c = -2.0 * np.sum(np.log(np.cosh(tril_np.astype(np.float64))))
    z = np.zeros((B, M, M), dtype=np.float64)
    k = 0
    for i in range(M):            # torch.tril_indices(offset=-1) row-major
        for j in range(i):
            z[:, i, j] = t[:, k]
            k += 1
    for i in range(M):
        cumsum = np.zeros(B, dtype=np.float64)
        for j in range(i):
            x = z[:, i, j] * np.sqrt(1.0 - cumsum)
            z[:, i, j] = x
            c += 0.5 * np.sum(np.log(1.0 - cumsum))
            cumsum += x * x
        z[:, i, i] = np.sqrt(1.0 - cumsum)
    return z, c


if __name__ == "__main__":
    # NOTE: at these tiny sizes the pallas_call fixed overhead dominates the
    # <100 FLOPs of useful work; the kernel is laid out so it scales when B
    # (or the number of fused LKJ factors) is large.

    # Case 1: module constructed as CholeskyLKJImpl(size=(2, 4), name="lkj").
    batch_size_prod = 2
    mat_size = 4
    tril_count = mat_size * (mat_size - 1) // 2              # 6

    key0 = jax.random.PRNGKey(0)
    key_a, key_b = jax.random.split(key0)
    tril = jax.random.normal(key_a, (batch_size_prod, tril_count),
                             dtype=jnp.float32)

    z, constraint = cholesky_lkj_forward(tril, mat_size, squeeze_batch=False)
    z = jax.block_until_ready(z)
    constraint = jax.block_until_ready(constraint)

    z_ref, c_ref = _reference_forward(np.asarray(tril), mat_size)
    np.testing.assert_allclose(np.asarray(z), z_ref, rtol=1e-5, atol=1e-5)
    np.testing.assert_allclose(float(constraint), c_ref, rtol=1e-5, atol=1e-4)

    # Case 2: larger batch exercising the multi-tile (grid over B) path.
    batch2 = 300
    tril2 = jax.random.normal(key_b, (batch2, tril_count), dtype=jnp.float32)
    z2, c2 = cholesky_lkj_forward(tril2, mat_size)
    z2 = jax.block_until_ready(z2)
    c2 = jax.block_until_ready(c2)

    z2_ref, c2_ref = _reference_forward(np.asarray(tril2), mat_size)
    np.testing.assert_allclose(np.asarray(z2), z2_ref, rtol=1e-5, atol=1e-5)
    np.testing.assert_allclose(float(c2), c2_ref, rtol=1e-4, atol=1e-3)

    # Case 3: int size (CholeskyLKJImpl(size=3)) -> squeeze_batch path, M=3.
    mat3 = 3
    tril3 = jax.random.normal(jax.random.fold_in(key0, 3),
                              (1, mat3 * (mat3 - 1) // 2), dtype=jnp.float32)
    z3, c3 = cholesky_lkj_forward(tril3, mat3, squeeze_batch=True)
    z3 = jax.block_until_ready(z3)
    c3 = jax.block_until_ready(c3)

    z3_ref, c3_ref = _reference_forward(np.asarray(tril3), mat3)
    np.testing.assert_allclose(np.asarray(z3), z3_ref[0], rtol=1e-5, atol=1e-5)
    np.testing.assert_allclose(float(c3), c3_ref, rtol=1e-5, atol=1e-4)

    print("KERNEL_OK")
</pallas_src>

<mosaic_0001>
module attributes {stable_mosaic.version = 11 : i64} {
  func.func @_cholesky_lkj_kernel(%arg0: i32, %arg1: memref<8x1xf32, #tpu.memory_space<vmem>>, %arg2: memref<8x8xf32, #tpu.memory_space<vmem>>, %arg3: memref<8x8xf32, #tpu.memory_space<vmem>>, %arg4: memref<16x8xf32, #tpu.memory_space<vmem>>, %arg5: memref<16x8xf32, #tpu.memory_space<vmem>>, %arg6: memref<8x128xf32, #tpu.memory_space<vmem>>, %arg7: memref<16x128xf32, #tpu.memory_space<vmem>>, %arg8: memref<1x128xf32, #tpu.memory_space<vmem>>) attributes {dimension_semantics = [#tpu.dimension_semantics<parallel>], iteration_bounds = array<i64: 1>, scalar_prefetch = 0 : i64, scratch_operands = 0 : i64, tpu.core_type = #tpu.core_type<tc>, window_params = [{pipeline_mode = #tpu.pipeline_mode<synchronous>, transform_indices = @transform_0, window_bounds = array<i64: 8, 1>}, {pipeline_mode = #tpu.pipeline_mode<synchronous>, transform_indices = @transform_1, window_bounds = array<i64: 8, 8>}, {pipeline_mode = #tpu.pipeline_mode<synchronous>, transform_indices = @transform_2, window_bounds = array<i64: 8, 8>}, {pipeline_mode = #tpu.pipeline_mode<synchronous>, transform_indices = @transform_3, window_bounds = array<i64: 16, 8>}, {pipeline_mode = #tpu.pipeline_mode<synchronous>, transform_indices = @transform_4, window_bounds = array<i64: 16, 8>}, {transform_indices = @transform_5, window_bounds = array<i64: 8, 128>}, {transform_indices = @transform_6, window_bounds = array<i64: 16, 128>}, {transform_indices = @transform_7, window_bounds = array<i64: 1, 128>}]} {
    %c0 = arith.constant 0 : index
    %c0_0 = arith.constant 0 : index
    %0 = vector.load %arg6[%c0, %c0_0] : memref<8x128xf32, #tpu.memory_space<vmem>>, vector<8x128xf32>
    %1 = math.absf %0 : vector<8x128xf32>
    %cst = arith.constant -2.000000e+00 : f32
    %2 = vector.broadcast %cst : f32 to vector<8x128xf32>
    %3 = arith.mulf %2, %1 : vector<8x128xf32>
    %4 = math.exp %3 : vector<8x128xf32>
    %cst_1 = arith.constant 1.000000e+00 : f32
    %5 = vector.broadcast %cst_1 : f32 to vector<8x128xf32>
    %6 = arith.addf %5, %4 : vector<8x128xf32>
    %7 = math.log %6 : vector<8x128xf32>
    %8 = arith.addf %1, %7 : vector<8x128xf32>
    %cst_2 = arith.constant 0.693147182 : f32
    %9 = vector.broadcast %cst_2 : f32 to vector<8x128xf32>
    %10 = arith.subf %8, %9 : vector<8x128xf32>
    %11 = math.tanh %0 : vector<8x128xf32>
    %c0_3 = arith.constant 0 : index
    %c0_4 = arith.constant 0 : index
    %12 = vector.load %arg1[%c0_3, %c0_4] : memref<8x1xf32, #tpu.memory_space<vmem>>, vector<8x1xf32>
    %13 = vector.broadcast %12 : vector<8x1xf32> to vector<8x128xf32>
    %14 = arith.mulf %13, %10 : vector<8x128xf32>
    %cst_5 = arith.constant dense<0.000000e+00> : vector<128xf32>
    %15 = vector.multi_reduction <add>, %14, %cst_5 [0] : vector<8x128xf32> to vector<128xf32>
    %16 = vector.shape_cast %15 : vector<128xf32> to vector<1x128xf32>
    %cst_6 = arith.constant 0.000000e+00 : f32
    %17 = vector.broadcast %cst_6 : f32 to vector<1x128xf32>
    %18 = arith.subf %17, %16 : vector<1x128xf32>
    %c0_7 = arith.constant 0 : index
    %c0_8 = arith.constant 0 : index
    %19 = vector.load %arg8[%c0_7, %c0_8] : memref<1x128xf32, #tpu.memory_space<vmem>>, vector<1x128xf32>
    tpu.vector_store %arg8[%c0_7, %c0_8], %18 {strides = array<i32>} : memref<1x128xf32, #tpu.memory_space<vmem>>, vector<1x128xf32>,
    %c0_9 = arith.constant 0 : index
    %c0_10 = arith.constant 0 : index
    %20 = vector.load %arg2[%c0_9, %c0_10] : memref<8x8xf32, #tpu.memory_space<vmem>>, vector<8x8xf32>
    %cst_11 = arith.constant dense<0.000000e+00> : vector<8x128xf32>
    %21 = tpu.matmul %20, %10, %cst_11 {dimension_numbers = #tpu.dot_dimension_numbers<[1], [0], [0], [1], [0, 0, 1, 1], [], []>, precision = #tpu.contract_precision<fp32>} : vector<8x8xf32>, vector<8x128xf32>, vector<8x128xf32> -> vector<8x128xf32>
    %c0_12 = arith.constant 0 : index
    %c0_13 = arith.constant 0 : index
    %22 = vector.load %arg3[%c0_12, %c0_13] : memref<8x8xf32, #tpu.memory_space<vmem>>, vector<8x8xf32>
    %cst_14 = arith.constant dense<0.000000e+00> : vector<8x128xf32>
    %23 = tpu.matmul %22, %10, %cst_14 {dimension_numbers = #tpu.dot_dimension_numbers<[1], [0], [0], [1], [0, 0, 1, 1], [], []>, precision = #tpu.contract_precision<fp32>} : vector<8x8xf32>, vector<8x128xf32>, vector<8x128xf32> -> vector<8x128xf32>
    %cst_15 = arith.constant 0.000000e+00 : f32
    %24 = vector.broadcast %cst_15 : f32 to vector<8x128xf32>
    %25 = arith.subf %24, %21 : vector<8x128xf32>
    %26 = math.exp %25 : vector<8x128xf32>
    %27 = arith.mulf %11, %26 : vector<8x128xf32>
    %cst_16 = arith.constant 0.000000e+00 : f32
    %28 = vector.broadcast %cst_16 : f32 to vector<8x128xf32>
    %29 = arith.subf %28, %23 : vector<8x128xf32>
    %30 = math.exp %29 : vector<8x128xf32>
    %c0_17 = arith.constant 0 : index
    %c0_18 = arith.constant 0 : index
    %31 = vector.load %arg4[%c0_17, %c0_18] : memref<16x8xf32, #tpu.memory_space<vmem>>, vector<16x8xf32>
    %cst_19 = arith.constant dense<0.000000e+00> : vector<16x128xf32>
    %32 = tpu.matmul %31, %27, %cst_19 {dimension_numbers = #tpu.dot_dimension_numbers<[1], [0], [0], [1], [0, 0, 1, 1], [], []>, precision = #tpu.contract_precision<fp32>} : vector<16x8xf32>, vector<8x128xf32>, vector<16x128xf32> -> vector<16x128xf32>
    %c0_20 = arith.constant 0 : index
    %c0_21 = arith.constant 0 : index
    %33 = vector.load %arg5[%c0_20, %c0_21] : memref<16x8xf32, #tpu.memory_space<vmem>>, vector<16x8xf32>
    %cst_22 = arith.constant dense<0.000000e+00> : vector<16x128xf32>
    %34 = tpu.matmul %33, %30, %cst_22 {dimension_numbers = #tpu.dot_dimension_numbers<[1], [0], [0], [1], [0, 0, 1, 1], [], []>, precision = #tpu.contract_precision<fp32>} : vector<16x8xf32>, vector<8x128xf32>, vector<16x128xf32> -> vector<16x128xf32>
    %35 = arith.addf %32, %34 : vector<16x128xf32>
    %c0_23 = arith.constant 0 : index
    %c0_24 = arith.constant 0 : index
    %36 = vector.load %arg7[%c0_23, %c0_24] : memref<16x128xf32, #tpu.memory_space<vmem>>, vector<16x128xf32>
    tpu.vector_store %arg7[%c0_23, %c0_24], %35 {strides = array<i32>} : memref<16x128xf32, #tpu.memory_space<vmem>>, vector<16x128xf32>,
    return
  }
  func.func @transform_0(%arg0: i32) -> (i32, i32) {
    %c0_i32 = arith.constant 0 : i32
    %c0_i32_0 = arith.constant 0 : i32
    %c0_i32_1 = arith.constant 0 : i32
    return %c0_i32, %c0_i32_0 : i32, i32
  }
  func.func @transform_1(%arg0: i32) -> (i32, i32) {
    %c0_i32 = arith.constant 0 : i32
    %c0_i32_0 = arith.constant 0 : i32
    %c0_i32_1 = arith.constant 0 : i32
    return %c0_i32, %c0_i32_0 : i32, i32
  }
  func.func @transform_2(%arg0: i32) -> (i32, i32) {
    %c0_i32 = arith.constant 0 : i32
    %c0_i32_0 = arith.constant 0 : i32
    %c0_i32_1 = arith.constant 0 : i32
    return %c0_i32, %c0_i32_0 : i32, i32
  }
  func.func @transform_3(%arg0: i32) -> (i32, i32) {
    %c0_i32 = arith.constant 0 : i32
    %c0_i32_0 = arith.constant 0 : i32
    %c0_i32_1 = arith.constant 0 : i32
    return %c0_i32, %c0_i32_0 : i32, i32
  }
  func.func @transform_4(%arg0: i32) -> (i32, i32) {
    %c0_i32 = arith.constant 0 : i32
    %c0_i32_0 = arith.constant 0 : i32
    %c0_i32_1 = arith.constant 0 : i32
    return %c0_i32, %c0_i32_0 : i32, i32
  }
  func.func @transform_5(%arg0: i32) -> (i32, i32) {
    %c0_i32 = arith.constant 0 : i32
    %c0_i32_0 = arith.constant 0 : i32
    return %c0_i32, %arg0 : i32, i32
  }
  func.func @transform_6(%arg0: i32) -> (i32, i32) {
    %c0_i32 = arith.constant 0 : i32
    %c0_i32_0 = arith.constant 0 : i32
    return %c0_i32, %arg0 : i32, i32
  }
  func.func @transform_7(%arg0: i32) -> (i32, i32) {
    %c0_i32 = arith.constant 0 : i32
    %c0_i32_0 = arith.constant 0 : i32
    return %c0_i32, %arg0 : i32, i32
  }
}

</mosaic_0001>

<llo_original>
// kernel: tpu_custom_call.1
$region0: #{tpu_custom_call.1}
  #allocation0 [shape = 'u32[]', space=smem, size = 0x4, offset = 0x4, fixed_abs, tag = 'smem constant byte address 0x4 - core index']
  #allocation1 [shape = 'u32[72,128]{1,0:T(1,128)}', space=vmem, size = 0x9000, scoped, tag = 'internal scratch']
  %s0 = inlined_call_operand.vmem [shape: f32[8,1], index: 0, kind: input, shape index: {}]
  %s1 = inlined_call_operand.vmem [shape: f32[8,8], index: 1, kind: input, shape index: {}]
  %s2 = inlined_call_operand.vmem [shape: f32[8,8], index: 2, kind: input, shape index: {}]
  %s3 = inlined_call_operand.vmem [shape: f32[16,8], index: 3, kind: input, shape index: {}]
  %s4 = inlined_call_operand.vmem [shape: f32[16,8], index: 4, kind: input, shape index: {}]
  %s5 = inlined_call_operand.vmem [shape: f32[8,128], index: 5, kind: input, shape index: {}]
  %s6 = inlined_call_operand.hbm [shape: f32[16,128], index: 6, kind: output, shape index: {0}]
  %s7 = inlined_call_operand.hbm [shape: f32[1,128], index: 7, kind: output, shape index: {1}]
  %8 = xla_tuple %s6, %s7
  %s9 = sld [smem:[#allocation0]]
  $region42: #{tpu_custom_call.1} parent=0
    _
  %s11 = ssub.s32 1, %s9
  %s12 = scalar_select 0, %s11, %s9
  $region1: #{tpu_custom_call.1} parent=0
    #allocation2 [shape = 'u8[8192]{0}', space=vmem, size = 0x2000, scoped, tag = 'output window, operand 0, single buffered']
    #allocation3 [shape = 's32[1]{0}', space=sflag, size = 0x4, scoped, tag = 'scoped memory for tpu_custom_call.1']
    #allocation4 [shape = 'u8[512]{0}', space=vmem, size = 0x400, scoped, tag = 'output window, operand 1, single buffered']
    #allocation5 [shape = 's32[1]{0}', space=sflag, size = 0x4, scoped, tag = 'scoped memory for tpu_custom_call.1']
    %13 = vsyncpa [#allocation3], 0
    %14 = vsyncpa [#allocation5], 0
    // Predicated region
    $region2: #{tpu_custom_call.1} parent=1 // pred_check
      _
    $region3: #{tpu_custom_call.1} parent=1 // pred_check_branch
      %16 = sbr.rel (0) target = $region5
    $region4: #{tpu_custom_call.1} parent=1 // pred_region
      _
    $region5: #{tpu_custom_call.1} parent=1 // pred_fallthru
      _
    // Predicated region
    $region6: #{tpu_custom_call.1} parent=1 // pred_check
      _
    $region7: #{tpu_custom_call.1} parent=1 // pred_check_branch
      %18 = sbr.rel (0) target = $region9
    $region8: #{tpu_custom_call.1} parent=1 // pred_region
      _
    $region9: #{tpu_custom_call.1} parent=1 // pred_fallthru
      _
    // Predicated region
    $region10: #{tpu_custom_call.1} parent=1 // pred_check
      _
    $region11: #{tpu_custom_call.1} parent=1 // pred_check_branch
      %20 = sbr.rel (0) target = $region13
    $region12: #{tpu_custom_call.1} parent=1 // pred_region
      _
    $region13: #{tpu_custom_call.1} parent=1 // pred_fallthru
      _
    // Predicated region
    $region14: #{tpu_custom_call.1} parent=1 // pred_check
      _
    $region15: #{tpu_custom_call.1} parent=1 // pred_check_branch
      %22 = sbr.rel (0) target = $region17
    $region16: #{tpu_custom_call.1} parent=1 // pred_region
      _
    $region17: #{tpu_custom_call.1} parent=1 // pred_fallthru
      _
    // Predicated region
    $region18: #{tpu_custom_call.1} parent=1 // pred_check
      _
    $region19: #{tpu_custom_call.1} parent=1 // pred_check_branch
      %24 = sbr.rel (0) target = $region21
    $region20: #{tpu_custom_call.1} parent=1 // pred_region
      _
    $region21: #{tpu_custom_call.1} parent=1 // pred_fallthru
      _
    // Predicated region
    $region22: #{tpu_custom_call.1} parent=1 // pred_check
      _
    $region23: #{tpu_custom_call.1} parent=1 // pred_check_branch
      %26 = sbr.rel (0) target = $region25
    $region24: #{tpu_custom_call.1} parent=1 // pred_region
      _
    $region25: #{tpu_custom_call.1} parent=1 // pred_fallthru
      _
    %v27 = vld [vmem:[%s5] sm:$0xff]
    %v28 = vand.u32 2147483647, %v27
    %v29 = vmul.f32 %v28, -2.0
    %v30 = vmul.f32 %v29, 1.442695
    %v31 = vpow.pop %v30
    %v32 = vadd.f32 %v31, 1.0
    %v33 = vlog2.pop %v32
    %v34 = vmul.f32 %v33, 0.6931472
    %v35 = vadd.f32 %v28, %v34
    %v36 = vsub.f32 %v35, 0.6931472
    %v37 = vtanh.pop %v27
    %v38 = vld [vmem:[%s0] sm:$0xff]
    %40 = vset.pattern.permute.xlu0 0
    %41 = vperm.xlu0 %40, %v38
    %v42 = vpop.permute.xlu0 %41
    %v44 = vmul.f32 %v42, %v36
    %v45 = vrot.slane %v44, 4
    %v46 = vadd.f32 %v44, %v45
    %v47 = vrot.slane %v46, 2
    %v48 = vadd.f32 %v46, %v47
    %v49 = vrot.slane %v48, 1
    %v50 = vadd.f32 %v48, %v49
    %v51 = vsub.f32 0.0, %v50
    %52 = vst [vmem:[#allocation4] sm:$0x1] %v51
    %v53 = vld [vmem:[%s1] sm:$0xff]
    %vm54 = vcmask 64512
    %v56 = vsel %vm54, %v53, 0
    %58 = vmatpush.msra.mxu0 0.0
    %59 = vmatpush.msra.mxu0 0.0
    %60 = vmatpush.msra.mxu0 0.0
    %61 = vmatpush.msra.mxu0 0.0
    %62 = vmatpush.msra.mxu0 0.0
    %63 = vmatpush.msra.mxu0 0.0
    %64 = vmatpush.msra.mxu0 0.0
    %65 = vmatpush.msra.mxu0 0.0
    %66 = vmatpush.msra.mxu0 0.0
    %67 = vmatpush.msra.mxu0 0.0
    %68 = vmatpush.msra.mxu0 0.0
    %69 = vmatpush.msra.mxu0 0.0
    %70 = vmatpush.msra.mxu0 0.0
    %71 = vmatpush.msra.mxu0 0.0
    %72 = vmatpush.msra.mxu0 0.0
    %v73 = vand.u32 %v36, 4294901760
    %74 = vmatpush.msra.mxu0 %v73
    %v75 = vand.u32 %v56, 4294901760
    %v76 = vsub.f32 %v56, %v75
    %v77 = vand.u32 %v76, 4294901760
    %v78 = vsub.f32 %v76, %v77
    %v79 = vand.u32 %v78, 4294901760
    %80 = vmatmul.f32.gmra.mxu0 %v79
    %v81 = vpop.f32.mrf.mxu0
    %v82 = vadd.f32 0.0, %v81
    %83 = vdwg.mxu0
    %84 = vmatpush.msra.mxu0 0.0
    %85 = vmatpush.msra.mxu0 0.0
    %86 = vmatpush.msra.mxu0 0.0
    %87 = vmatpush.msra.mxu0 0.0
    %88 = vmatpush.msra.mxu0 0.0
    %89 = vmatpush.msra.mxu0 0.0
    %90 = vmatpush.msra.mxu0 0.0
    %91 = vmatpush.msra.mxu0 0.0
    %92 = vmatpush.msra.mxu0 0.0
    %93 = vmatpush.msra.mxu0 0.0
    %94 = vmatpush.msra.mxu0 0.0
    %95 = vmatpush.msra.mxu0 0.0
    %96 = vmatpush.msra.mxu0 0.0
    %97 = vmatpush.msra.mxu0 0.0
    %98 = vmatpush.msra.mxu0 0.0
    %v99 = vand.u32 %v36, 4294901760
    %v100 = vsub.f32 %v36, %v99
    %v101 = vand.u32 %v100, 4294901760
    %v102 = vsub.f32 %v100, %v101
    %v103 = vand.u32 %v102, 4294901760
    %104 = vmatpush.msra.mxu0 %v103
    %v105 = vand.u32 %v56, 4294901760
    %106 = vmatmul.f32.gmra.mxu0 %v105
    %v107 = vpop.f32.mrf.mxu0
    %v108 = vadd.f32 %v82, %v107
    %109 = vdwg.mxu0
    %110 = vmatpush.msra.mxu0 0.0
    %111 = vmatpush.msra.mxu0 0.0
    %112 = vmatpush.msra.mxu0 0.0
    %113 = vmatpush.msra.mxu0 0.0
    %114 = vmatpush.msra.mxu0 0.0
    %115 = vmatpush.msra.mxu0 0.0
    %116 = vmatpush.msra.mxu0 0.0
    %117 = vmatpush.msra.mxu0 0.0
    %118 = vmatpush.msra.mxu0 0.0
    %119 = vmatpush.msra.mxu0 0.0
    %120 = vmatpush.msra.mxu0 0.0
    %121 = vmatpush.msra.mxu0 0.0
    %122 = vmatpush.msra.mxu0 0.0
    %123 = vmatpush.msra.mxu0 0.0
    %124 = vmatpush.msra.mxu0 0.0
    %v125 = vand.u32 %v36, 4294901760
    %v126 = vsub.f32 %v36, %v125
    %127 = vmatpush.msra.mxu0 %v126
    %v128 = vand.u32 %v56, 4294901760
    %v129 = vsub.f32 %v56, %v128
    %130 = vmatmul.f32.gmra.mxu0 %v129
    %v131 = vpop.f32.mrf.mxu0
    %v132 = vadd.f32 %v108, %v131
    %133 = vdwg.mxu0
    %134 = vmatpush.msra.mxu0 0.0
    %135 = vmatpush.msra.mxu0 0.0
    %136 = vmatpush.msra.mxu0 0.0
    %137 = vmatpush.msra.mxu0 0.0
    %138 = vmatpush.msra.mxu0 0.0
    %139 = vmatpush.msra.mxu0 0.0
    %140 = vmatpush.msra.mxu0 0.0
    %141 = vmatpush.msra.mxu0 0.0
    %142 = vmatpush.msra.mxu0 0.0
    %143 = vmatpush.msra.mxu0 0.0
    %144 = vmatpush.msra.mxu0 0.0
    %145 = vmatpush.msra.mxu0 0.0
    %146 = vmatpush.msra.mxu0 0.0
    %147 = vmatpush.msra.mxu0 0.0
    %148 = vmatpush.msra.mxu0 0.0
    %v149 = vand.u32 %v36, 4294901760
    %150 = vmatpush.msra.mxu0 %v149
    %v151 = vand.u32 %v56, 4294901760
    %v152 = vsub.f32 %v56, %v151
    %v153 = vand.u32 %v152, 4294901760
    %154 = vmatmul.f32.gmra.mxu0 %v153
    %v155 = vpop.f32.mrf.mxu0
    %v156 = vadd.f32 %v132, %v155
    %157 = vdwg.mxu0
    %158 = vmatpush.msra.mxu0 0.0
    %159 = vmatpush.msra.mxu0 0.0
    %160 = vmatpush.msra.mxu0 0.0
    %161 = vmatpush.msra.mxu0 0.0
    %162 = vmatpush.msra.mxu0 0.0
    %163 = vmatpush.msra.mxu0 0.0
    %164 = vmatpush.msra.mxu0 0.0
    %165 = vmatpush.msra.mxu0 0.0
    %166 = vmatpush.msra.mxu0 0.0
    %167 = vmatpush.msra.mxu0 0.0
    %168 = vmatpush.msra.mxu0 0.0
    %169 = vmatpush.msra.mxu0 0.0
    %170 = vmatpush.msra.mxu0 0.0
    %171 = vmatpush.msra.mxu0 0.0
    %172 = vmatpush.msra.mxu0 0.0
    %v173 = vand.u32 %v36, 4294901760
    %v174 = vsub.f32 %v36, %v173
    %v175 = vand.u32 %v174, 4294901760
    %176 = vmatpush.msra.mxu0 %v175
    %v177 = vand.u32 %v56, 4294901760
    %178 = vmatmul.f32.gmra.mxu0 %v177
    %v179 = vpop.f32.mrf.mxu0
    %v180 = vadd.f32 %v156, %v179
    %181 = vdwg.mxu0
    %182 = vmatpush.msra.mxu0 0.0
    %183 = vmatpush.msra.mxu0 0.0
    %184 = vmatpush.msra.mxu0 0.0
    %185 = vmatpush.msra.mxu0 0.0
    %186 = vmatpush.msra.mxu0 0.0
    %187 = vmatpush.msra.mxu0 0.0
    %188 = vmatpush.msra.mxu0 0.0
    %189 = vmatpush.msra.mxu0 0.0
    %190 = vmatpush.msra.mxu0 0.0
    %191 = vmatpush.msra.mxu0 0.0
    %192 = vmatpush.msra.mxu0 0.0
    %193 = vmatpush.msra.mxu0 0.0
    %194 = vmatpush.msra.mxu0 0.0
    %195 = vmatpush.msra.mxu0 0.0
    %196 = vmatpush.msra.mxu0 0.0
    %v197 = vand.u32 %v36, 4294901760
    %198 = vmatpush.msra.mxu0 %v197
    %v199 = vand.u32 %v56, 4294901760
    %200 = vmatmul.f32.gmra.mxu0 %v199
    %v201 = vpop.f32.mrf.mxu0
    %v202 = vadd.f32 %v180, %v201
    %203 = vdwg.mxu0
    %v204 = vld [vmem:[%s2] sm:$0xff]
    %v206 = vsel %vm54, %v204, 0
    %208 = vmatpush.msra.mxu0 0.0
    %209 = vmatpush.msra.mxu0 0.0
    %210 = vmatpush.msra.mxu0 0.0
    %211 = vmatpush.msra.mxu0 0.0
    %212 = vmatpush.msra.mxu0 0.0
    %213 = vmatpush.msra.mxu0 0.0
    %214 = vmatpush.msra.mxu0 0.0
    %215 = vmatpush.msra.mxu0 0.0
    %216 = vmatpush.msra.mxu0 0.0
    %217 = vmatpush.msra.mxu0 0.0
    %218 = vmatpush.msra.mxu0 0.0
    %219 = vmatpush.msra.mxu0 0.0
    %220 = vmatpush.msra.mxu0 0.0
    %221 = vmatpush.msra.mxu0 0.0
    %222 = vmatpush.msra.mxu0 0.0
    %v223 = vand.u32 %v36, 4294901760
    %224 = vmatpush.msra.mxu0 %v223
    %v225 = vand.u32 %v206, 4294901760
    %v226 = vsub.f32 %v206, %v225
    %v227 = vand.u32 %v226, 4294901760
    %v228 = vsub.f32 %v226, %v227
    %v229 = vand.u32 %v228, 4294901760
    %230 = vmatmul.f32.gmra.mxu0 %v229
    %v231 = vpop.f32.mrf.mxu0
    %v232 = vadd.f32 0.0, %v231
    %233 = vdwg.mxu0
    %234 = vmatpush.msra.mxu0 0.0
    %235 = vmatpush.msra.mxu0 0.0
    %236 = vmatpush.msra.mxu0 0.0
    %237 = vmatpush.msra.mxu0 0.0
    %238 = vmatpush.msra.mxu0 0.0
    %239 = vmatpush.msra.mxu0 0.0
    %240 = vmatpush.msra.mxu0 0.0
    %241 = vmatpush.msra.mxu0 0.0
    %242 = vmatpush.msra.mxu0 0.0
    %243 = vmatpush.msra.mxu0 0.0
    %244 = vmatpush.msra.mxu0 0.0
    %245 = vmatpush.msra.mxu0 0.0
    %246 = vmatpush.msra.mxu0 0.0
    %247 = vmatpush.msra.mxu0 0.0
    %248 = vmatpush.msra.mxu0 0.0
    %v249 = vand.u32 %v36, 4294901760
    %v250 = vsub.f32 %v36, %v249
    %v251 = vand.u32 %v250, 4294901760
    %v252 = vsub.f32 %v250, %v251
    %v253 = vand.u32 %v252, 4294901760
    %254 = vmatpush.msra.mxu0 %v253
    %v255 = vand.u32 %v206, 4294901760
    %256 = vmatmul.f32.gmra.mxu0 %v255
    %v257 = vpop.f32.mrf.mxu0
    %v258 = vadd.f32 %v232, %v257
    %259 = vdwg.mxu0
    %260 = vmatpush.msra.mxu0 0.0
    %261 = vmatpush.msra.mxu0 0.0
    %262 = vmatpush.msra.mxu0 0.0
    %263 = vmatpush.msra.mxu0 0.0
    %264 = vmatpush.msra.mxu0 0.0
    %265 = vmatpush.msra.mxu0 0.0
    %266 = vmatpush.msra.mxu0 0.0
    %267 = vmatpush.msra.mxu0 0.0
    %268 = vmatpush.msra.mxu0 0.0
    %269 = vmatpush.msra.mxu0 0.0
    %270 = vmatpush.msra.mxu0 0.0
    %271 = vmatpush.msra.mxu0 0.0
    %272 = vmatpush.msra.mxu0 0.0
    %273 = vmatpush.msra.mxu0 0.0
    %274 = vmatpush.msra.mxu0 0.0
    %v275 = vand.u32 %v36, 4294901760
    %v276 = vsub.f32 %v36, %v275
    %277 = vmatpush.msra.mxu0 %v276
    %v278 = vand.u32 %v206, 4294901760
    %v279 = vsub.f32 %v206, %v278
    %280 = vmatmul.f32.gmra.mxu0 %v279
    %v281 = vpop.f32.mrf.mxu0
    %v282 = vadd.f32 %v258, %v281
    %283 = vdwg.mxu0
    %284 = vmatpush.msra.mxu0 0.0
    %285 = vmatpush.msra.mxu0 0.0
    %286 = vmatpush.msra.mxu0 0.0
    %287 = vmatpush.msra.mxu0 0.0
    %288 = vmatpush.msra.mxu0 0.0
    %289 = vmatpush.msra.mxu0 0.0
    %290 = vmatpush.msra.mxu0 0.0
    %291 = vmatpush.msra.mxu0 0.0
    %292 = vmatpush.msra.mxu0 0.0
    %293 = vmatpush.msra.mxu0 0.0
    %294 = vmatpush.msra.mxu0 0.0
    %295 = vmatpush.msra.mxu0 0.0
    %296 = vmatpush.msra.mxu0 0.0
    %297 = vmatpush.msra.mxu0 0.0
    %298 = vmatpush.msra.mxu0 0.0
    %v299 = vand.u32 %v36, 4294901760
    %300 = vmatpush.msra.mxu0 %v299
    %v301 = vand.u32 %v206, 4294901760
    %v302 = vsub.f32 %v206, %v301
    %v303 = vand.u32 %v302, 4294901760
    %304 = vmatmul.f32.gmra.mxu0 %v303
    %v305 = vpop.f32.mrf.mxu0
    %v306 = vadd.f32 %v282, %v305
    %307 = vdwg.mxu0
    %308 = vmatpush.msra.mxu0 0.0
    %309 = vmatpush.msra.mxu0 0.0
    %310 = vmatpush.msra.mxu0 0.0
    %311 = vmatpush.msra.mxu0 0.0
    %312 = vmatpush.msra.mxu0 0.0
    %313 = vmatpush.msra.mxu0 0.0
    %314 = vmatpush.msra.mxu0 0.0
    %315 = vmatpush.msra.mxu0 0.0
    %316 = vmatpush.msra.mxu0 0.0
    %317 = vmatpush.msra.mxu0 0.0
    %318 = vmatpush.msra.mxu0 0.0
    %319 = vmatpush.msra.mxu0 0.0
    %320 = vmatpush.msra.mxu0 0.0
    %321 = vmatpush.msra.mxu0 0.0
    %322 = vmatpush.msra.mxu0 0.0
    %v323 = vand.u32 %v36, 4294901760
    %v324 = vsub.f32 %v36, %v323
    %v325 = vand.u32 %v324, 4294901760
    %326 = vmatpush.msra.mxu0 %v325
    %v327 = vand.u32 %v206, 4294901760
    %328 = vmatmul.f32.gmra.mxu0 %v327
    %v329 = vpop.f32.mrf.mxu0
    %v330 = vadd.f32 %v306, %v329
    %331 = vdwg.mxu0
    %332 = vmatpush.msra.mxu0 0.0
    %333 = vmatpush.msra.mxu0 0.0
    %334 = vmatpush.msra.mxu0 0.0
    %335 = vmatpush.msra.mxu0 0.0
    %336 = vmatpush.msra.mxu0 0.0
    %337 = vmatpush.msra.mxu0 0.0
    %338 = vmatpush.msra.mxu0 0.0
    %339 = vmatpush.msra.mxu0 0.0
    %340 = vmatpush.msra.mxu0 0.0
    %341 = vmatpush.msra.mxu0 0.0
    %342 = vmatpush.msra.mxu0 0.0
    %343 = vmatpush.msra.mxu0 0.0
    %344 = vmatpush.msra.mxu0 0.0
    %345 = vmatpush.msra.mxu0 0.0
    %346 = vmatpush.msra.mxu0 0.0
    %v347 = vand.u32 %v36, 4294901760
    %348 = vmatpush.msra.mxu0 %v347
    %v349 = vand.u32 %v206, 4294901760
    %350 = vmatmul.f32.gmra.mxu0 %v349
    %v351 = vpop.f32.mrf.mxu0
    %v352 = vadd.f32 %v330, %v351
    %353 = vdwg.mxu0
    %v354 = vsub.f32 0.0, %v202
    %v355 = vmul.f32 %v354, 1.442695
    %v356 = vpow.pop %v355
    %v357 = vmul.f32 %v37, %v356
    %v358 = vsub.f32 0.0, %v352
    %v359 = vmul.f32 %v358, 1.442695
    %v360 = vpow.pop %v359
    %v361 = vld [vmem:[%s3] sm:$0xff]
    %v362 = vld [vmem:[%s3 + $0x8] sm:$0xff]
    %v363 = vld [vmem:[%s4] sm:$0xff]
    %v364 = vld [vmem:[%s4 + $0x8] sm:$0xff]
    %v366 = vsel %vm54, %v363, 0
    %v369 = vsel %vm54, %v364, 0
    %371 = vmatpush.msra.mxu0 0.0
    %372 = vmatpush.msra.mxu0 0.0
    %373 = vmatpush.msra.mxu0 0.0
    %374 = vmatpush.msra.mxu0 0.0
    %375 = vmatpush.msra.mxu0 0.0
    %376 = vmatpush.msra.mxu0 0.0
    %377 = vmatpush.msra.mxu0 0.0
    %378 = vmatpush.msra.mxu0 0.0
    %379 = vmatpush.msra.mxu0 0.0
    %380 = vmatpush.msra.mxu0 0.0
    %381 = vmatpush.msra.mxu0 0.0
    %382 = vmatpush.msra.mxu0 0.0
    %383 = vmatpush.msra.mxu0 0.0
    %384 = vmatpush.msra.mxu0 0.0
    %385 = vmatpush.msra.mxu0 0.0
    %v386 = vand.u32 %v360, 4294901760
    %387 = vmatpush.msra.mxu0 %v386
    %v388 = vand.u32 %v366, 4294901760
    %v389 = vsub.f32 %v366, %v388
    %v390 = vand.u32 %v389, 4294901760
    %v391 = vsub.f32 %v389, %v390
    %v392 = vand.u32 %v391, 4294901760
    %393 = vmatmul.f32.gmra.mxu0 %v392
    %v394 = vpop.f32.mrf.mxu0
    %v395 = vadd.f32 0.0, %v394
    %v396 = vand.u32 %v369, 4294901760
    %v397 = vsub.f32 %v369, %v396
    %v398 = vand.u32 %v397, 4294901760
    %v399 = vsub.f32 %v397, %v398
    %v400 = vand.u32 %v399, 4294901760
    %401 = vmatmul.f32.gmra.mxu0 %v400
    %v402 = vpop.f32.mrf.mxu0
    %v403 = vadd.f32 0.0, %v402
    %404 = vdwg.mxu0
    %405 = vmatpush.msra.mxu0 0.0
    %406 = vmatpush.msra.mxu0 0.0
    %407 = vmatpush.msra.mxu0 0.0
    %408 = vmatpush.msra.mxu0 0.0
    %409 = vmatpush.msra.mxu0 0.0
    %410 = vmatpush.msra.mxu0 0.0
    %411 = vmatpush.msra.mxu0 0.0
    %412 = vmatpush.msra.mxu0 0.0
    %413 = vmatpush.msra.mxu0 0.0
    %414 = vmatpush.msra.mxu0 0.0
    %415 = vmatpush.msra.mxu0 0.0
    %416 = vmatpush.msra.mxu0 0.0
    %417 = vmatpush.msra.mxu0 0.0
    %418 = vmatpush.msra.mxu0 0.0
    %419 = vmatpush.msra.mxu0 0.0
    %v420 = vand.u32 %v360, 4294901760
    %v421 = vsub.f32 %v360, %v420
    %v422 = vand.u32 %v421, 4294901760
    %v423 = vsub.f32 %v421, %v422
    %v424 = vand.u32 %v423, 4294901760
    %425 = vmatpush.msra.mxu0 %v424
    %v426 = vand.u32 %v366, 4294901760
    %427 = vmatmul.f32.gmra.mxu0 %v426
    %v428 = vpop.f32.mrf.mxu0
    %v429 = vadd.f32 %v395, %v428
    %v430 = vand.u32 %v369, 4294901760
    %431 = vmatmul.f32.gmra.mxu0 %v430
    %v432 = vpop.f32.mrf.mxu0
    %v433 = vadd.f32 %v403, %v432
    %434 = vdwg.mxu0
    %435 = vmatpush.msra.mxu0 0.0
    %436 = vmatpush.msra.mxu0 0.0
    %437 = vmatpush.msra.mxu0 0.0
    %438 = vmatpush.msra.mxu0 0.0
    %439 = vmatpush.msra.mxu0 0.0
    %440 = vmatpush.msra.mxu0 0.0
    %441 = vmatpush.msra.mxu0 0.0
    %442 = vmatpush.msra.mxu0 0.0
    %443 = vmatpush.msra.mxu0 0.0
    %444 = vmatpush.msra.mxu0 0.0
    %445 = vmatpush.msra.mxu0 0.0
    %446 = vmatpush.msra.mxu0 0.0
    %447 = vmatpush.msra.mxu0 0.0
    %448 = vmatpush.msra.mxu0 0.0
    %449 = vmatpush.msra.mxu0 0.0
    %v450 = vand.u32 %v360, 4294901760
    %v451 = vsub.f32 %v360, %v450
    %452 = vmatpush.msra.mxu0 %v451
    %v453 = vand.u32 %v366, 4294901760
    %v454 = vsub.f32 %v366, %v453
    %455 = vmatmul.f32.gmra.mxu0 %v454
    %v456 = vpop.f32.mrf.mxu0
    %v457 = vadd.f32 %v429, %v456
    %v458 = vand.u32 %v369, 4294901760
    %v459 = vsub.f32 %v369, %v458
    %460 = vmatmul.f32.gmra.mxu0 %v459
    %v461 = vpop.f32.mrf.mxu0
    %v462 = vadd.f32 %v433, %v461
    %463 = vdwg.mxu0
    %464 = vmatpush.msra.mxu0 0.0
    %465 = vmatpush.msra.mxu0 0.0
    %466 = vmatpush.msra.mxu0 0.0
    %467 = vmatpush.msra.mxu0 0.0
    %468 = vmatpush.msra.mxu0 0.0
    %469 = vmatpush.msra.mxu0 0.0
    %470 = vmatpush.msra.mxu0 0.0
    %471 = vmatpush.msra.mxu0 0.0
    %472 = vmatpush.msra.mxu0 0.0
    %473 = vmatpush.msra.mxu0 0.0
    %474 = vmatpush.msra.mxu0 0.0
    %475 = vmatpush.msra.mxu0 0.0
    %476 = vmatpush.msra.mxu0 0.0
    %477 = vmatpush.msra.mxu0 0.0
    %478 = vmatpush.msra.mxu0 0.0
    %v479 = vand.u32 %v360, 4294901760
    %480 = vmatpush.msra.mxu0 %v479
    %v481 = vand.u32 %v366, 4294901760
    %v482 = vsub.f32 %v366, %v481
    %v483 = vand.u32 %v482, 4294901760
    %484 = vmatmul.f32.gmra.mxu0 %v483
    %v485 = vpop.f32.mrf.mxu0
    %v486 = vadd.f32 %v457, %v485
    %v487 = vand.u32 %v369, 4294901760
    %v488 = vsub.f32 %v369, %v487
    %v489 = vand.u32 %v488, 4294901760
    %490 = vmatmul.f32.gmra.mxu0 %v489
    %v491 = vpop.f32.mrf.mxu0
    %v492 = vadd.f32 %v462, %v491
    %493 = vdwg.mxu0
    %494 = vmatpush.msra.mxu0 0.0
    %495 = vmatpush.msra.mxu0 0.0
    %496 = vmatpush.msra.mxu0 0.0
    %497 = vmatpush.msra.mxu0 0.0
    %498 = vmatpush.msra.mxu0 0.0
    %499 = vmatpush.msra.mxu0 0.0
    %500 = vmatpush.msra.mxu0 0.0
    %501 = vmatpush.msra.mxu0 0.0
    %502 = vmatpush.msra.mxu0 0.0
    %503 = vmatpush.msra.mxu0 0.0
    %504 = vmatpush.msra.mxu0 0.0
    %505 = vmatpush.msra.mxu0 0.0
    %506 = vmatpush.msra.mxu0 0.0
    %507 = vmatpush.msra.mxu0 0.0
    %508 = vmatpush.msra.mxu0 0.0
    %v509 = vand.u32 %v360, 4294901760
    %v510 = vsub.f32 %v360, %v509
    %v511 = vand.u32 %v510, 4294901760
    %512 = vmatpush.msra.mxu0 %v511
    %v513 = vand.u32 %v366, 4294901760
    %514 = vmatmul.f32.gmra.mxu0 %v513
    %v515 = vpop.f32.mrf.mxu0
    %v516 = vadd.f32 %v486, %v515
    %v517 = vand.u32 %v369, 4294901760
    %518 = vmatmul.f32.gmra.mxu0 %v517
    %v519 = vpop.f32.mrf.mxu0
    %v520 = vadd.f32 %v492, %v519
    %521 = vdwg.mxu0
    %522 = vmatpush.msra.mxu0 0.0
    %523 = vmatpush.msra.mxu0 0.0
    %524 = vmatpush.msra.mxu0 0.0
    %525 = vmatpush.msra.mxu0 0.0
    %526 = vmatpush.msra.mxu0 0.0
    %527 = vmatpush.msra.mxu0 0.0
    %528 = vmatpush.msra.mxu0 0.0
    %529 = vmatpush.msra.mxu0 0.0
    %530 = vmatpush.msra.mxu0 0.0
    %531 = vmatpush.msra.mxu0 0.0
    %532 = vmatpush.msra.mxu0 0.0
    %533 = vmatpush.msra.mxu0 0.0
    %534 = vmatpush.msra.mxu0 0.0
    %535 = vmatpush.msra.mxu0 0.0
    %536 = vmatpush.msra.mxu0 0.0
    %v537 = vand.u32 %v360, 4294901760
    %538 = vmatpush.msra.mxu0 %v537
    %v539 = vand.u32 %v366, 4294901760
    %540 = vmatmul.f32.gmra.mxu0 %v539
    %v541 = vpop.f32.mrf.mxu0
    %v542 = vadd.f32 %v516, %v541
    %v543 = vand.u32 %v369, 4294901760
    %544 = vmatmul.f32.gmra.mxu0 %v543
    %v545 = vpop.f32.mrf.mxu0
    %v546 = vadd.f32 %v520, %v545
    %547 = vdwg.mxu0
    %v549 = vsel %vm54, %v361, 0
    %v552 = vsel %vm54, %v362, 0
    %554 = vmatpush.msra.mxu0 0.0
    %555 = vmatpush.msra.mxu0 0.0
    %556 = vmatpush.msra.mxu0 0.0
    %557 = vmatpush.msra.mxu0 0.0
    %558 = vmatpush.msra.mxu0 0.0
    %559 = vmatpush.msra.mxu0 0.0
    %560 = vmatpush.msra.mxu0 0.0
    %561 = vmatpush.msra.mxu0 0.0
    %562 = vmatpush.msra.mxu0 0.0
    %563 = vmatpush.msra.mxu0 0.0
    %564 = vmatpush.msra.mxu0 0.0
    %565 = vmatpush.msra.mxu0 0.0
    %566 = vmatpush.msra.mxu0 0.0
    %567 = vmatpush.msra.mxu0 0.0
    %568 = vmatpush.msra.mxu0 0.0
    %v569 = vand.u32 %v357, 4294901760
    %570 = vmatpush.msra.mxu0 %v569
    %v571 = vand.u32 %v549, 4294901760
    %v572 = vsub.f32 %v549, %v571
    %v573 = vand.u32 %v572, 4294901760
    %v574 = vsub.f32 %v572, %v573
    %v575 = vand.u32 %v574, 4294901760
    %576 = vmatmul.f32.gmra.mxu0 %v575
    %v577 = vpop.f32.mrf.mxu0
    %v578 = vadd.f32 %v542, %v577
    %v579 = vand.u32 %v552, 4294901760
    %v580 = vsub.f32 %v552, %v579
    %v581 = vand.u32 %v580, 4294901760
    %v582 = vsub.f32 %v580, %v581
    %v583 = vand.u32 %v582, 4294901760
    %584 = vmatmul.f32.gmra.mxu0 %v583
    %v585 = vpop.f32.mrf.mxu0
    %v586 = vadd.f32 %v546, %v585
    %587 = vdwg.mxu0
    %588 = vmatpush.msra.mxu0 0.0
    %589 = vmatpush.msra.mxu0 0.0
    %590 = vmatpush.msra.mxu0 0.0
    %591 = vmatpush.msra.mxu0 0.0
    %592 = vmatpush.msra.mxu0 0.0
    %593 = vmatpush.msra.mxu0 0.0
    %594 = vmatpush.msra.mxu0 0.0
    %595 = vmatpush.msra.mxu0 0.0
    %596 = vmatpush.msra.mxu0 0.0
    %597 = vmatpush.msra.mxu0 0.0
    %598 = vmatpush.msra.mxu0 0.0
    %599 = vmatpush.msra.mxu0 0.0
    %600 = vmatpush.msra.mxu0 0.0
    %601 = vmatpush.msra.mxu0 0.0
    %602 = vmatpush.msra.mxu0 0.0
    %v603 = vand.u32 %v357, 4294901760
    %v604 = vsub.f32 %v357, %v603
    %v605 = vand.u32 %v604, 4294901760
    %v606 = vsub.f32 %v604, %v605
    %v607 = vand.u32 %v606, 4294901760
    %608 = vmatpush.msra.mxu0 %v607
    %v609 = vand.u32 %v549, 4294901760
    %610 = vmatmul.f32.gmra.mxu0 %v609
    %v611 = vpop.f32.mrf.mxu0
    %v612 = vadd.f32 %v578, %v611
    %v613 = vand.u32 %v552, 4294901760
    %614 = vmatmul.f32.gmra.mxu0 %v613
    %v615 = vpop.f32.mrf.mxu0
    %v616 = vadd.f32 %v586, %v615
    %617 = vdwg.mxu0
    %618 = vmatpush.msra.mxu0 0.0
    %619 = vmatpush.msra.mxu0 0.0
    %620 = vmatpush.msra.mxu0 0.0
    %621 = vmatpush.msra.mxu0 0.0
    %622 = vmatpush.msra.mxu0 0.0
    %623 = vmatpush.msra.mxu0 0.0
    %624 = vmatpush.msra.mxu0 0.0
    %625 = vmatpush.msra.mxu0 0.0
    %626 = vmatpush.msra.mxu0 0.0
    %627 = vmatpush.msra.mxu0 0.0
    %628 = vmatpush.msra.mxu0 0.0
    %629 = vmatpush.msra.mxu0 0.0
    %630 = vmatpush.msra.mxu0 0.0
    %631 = vmatpush.msra.mxu0 0.0
    %632 = vmatpush.msra.mxu0 0.0
    %v633 = vand.u32 %v357, 4294901760
    %v634 = vsub.f32 %v357, %v633
    %635 = vmatpush.msra.mxu0 %v634
    %v636 = vand.u32 %v549, 4294901760
    %v637 = vsub.f32 %v549, %v636
    %638 = vmatmul.f32.gmra.mxu0 %v637
    %v639 = vpop.f32.mrf.mxu0
    %v640 = vadd.f32 %v612, %v639
    %v641 = vand.u32 %v552, 4294901760
    %v642 = vsub.f32 %v552, %v641
    %643 = vmatmul.f32.gmra.mxu0 %v642
    %v644 = vpop.f32.mrf.mxu0
    %v645 = vadd.f32 %v616, %v644
    %646 = vdwg.mxu0
    %647 = vmatpush.msra.mxu0 0.0
    %648 = vmatpush.msra.mxu0 0.0
    %649 = vmatpush.msra.mxu0 0.0
    %650 = vmatpush.msra.mxu0 0.0
    %651 = vmatpush.msra.mxu0 0.0
    %652 = vmatpush.msra.mxu0 0.0
    %653 = vmatpush.msra.mxu0 0.0
    %654 = vmatpush.msra.mxu0 0.0
    %655 = vmatpush.msra.mxu0 0.0
    %656 = vmatpush.msra.mxu0 0.0
    %657 = vmatpush.msra.mxu0 0.0
    %658 = vmatpush.msra.mxu0 0.0
    %659 = vmatpush.msra.mxu0 0.0
    %660 = vmatpush.msra.mxu0 0.0
    %661 = vmatpush.msra.mxu0 0.0
    %v662 = vand.u32 %v357, 4294901760
    %663 = vmatpush.msra.mxu0 %v662
    %v664 = vand.u32 %v549, 4294901760
    %v665 = vsub.f32 %v549, %v664
    %v666 = vand.u32 %v665, 4294901760
    %667 = vmatmul.f32.gmra.mxu0 %v666
    %v668 = vpop.f32.mrf.mxu0
    %v669 = vadd.f32 %v640, %v668
    %v670 = vand.u32 %v552, 4294901760
    %v671 = vsub.f32 %v552, %v670
    %v672 = vand.u32 %v671, 4294901760
    %673 = vmatmul.f32.gmra.mxu0 %v672
    %v674 = vpop.f32.mrf.mxu0
    %v675 = vadd.f32 %v645, %v674
    %676 = vdwg.mxu0
    %677 = vmatpush.msra.mxu0 0.0
    %678 = vmatpush.msra.mxu0 0.0
    %679 = vmatpush.msra.mxu0 0.0
    %680 = vmatpush.msra.mxu0 0.0
    %681 = vmatpush.msra.mxu0 0.0
    %682 = vmatpush.msra.mxu0 0.0
    %683 = vmatpush.msra.mxu0 0.0
    %684 = vmatpush.msra.mxu0 0.0
    %685 = vmatpush.msra.mxu0 0.0
    %686 = vmatpush.msra.mxu0 0.0
    %687 = vmatpush.msra.mxu0 0.0
    %688 = vmatpush.msra.mxu0 0.0
    %689 = vmatpush.msra.mxu0 0.0
    %690 = vmatpush.msra.mxu0 0.0
    %691 = vmatpush.msra.mxu0 0.0
    %v692 = vand.u32 %v357, 4294901760
    %v693 = vsub.f32 %v357, %v692
    %v694 = vand.u32 %v693, 4294901760
    %695 = vmatpush.msra.mxu0 %v694
    %v696 = vand.u32 %v549, 4294901760
    %697 = vmatmul.f32.gmra.mxu0 %v696
    %v698 = vpop.f32.mrf.mxu0
    %v699 = vadd.f32 %v669, %v698
    %v700 = vand.u32 %v552, 4294901760
    %701 = vmatmul.f32.gmra.mxu0 %v700
    %v702 = vpop.f32.mrf.mxu0
    %v703 = vadd.f32 %v675, %v702
    %704 = vdwg.mxu0
    %705 = vmatpush.msra.mxu0 0.0
    %706 = vmatpush.msra.mxu0 0.0
    %707 = vmatpush.msra.mxu0 0.0
    %708 = vmatpush.msra.mxu0 0.0
    %709 = vmatpush.msra.mxu0 0.0
    %710 = vmatpush.msra.mxu0 0.0
    %711 = vmatpush.msra.mxu0 0.0
    %712 = vmatpush.msra.mxu0 0.0
    %713 = vmatpush.msra.mxu0 0.0
    %714 = vmatpush.msra.mxu0 0.0
    %715 = vmatpush.msra.mxu0 0.0
    %716 = vmatpush.msra.mxu0 0.0
    %717 = vmatpush.msra.mxu0 0.0
    %718 = vmatpush.msra.mxu0 0.0
    %719 = vmatpush.msra.mxu0 0.0
    %v720 = vand.u32 %v357, 4294901760
    %721 = vmatpush.msra.mxu0 %v720
    %v722 = vand.u32 %v549, 4294901760
    %723 = vmatmul.f32.gmra.mxu0 %v722
    %v724 = vpop.f32.mrf.mxu0
    %v725 = vadd.f32 %v699, %v724
    %v726 = vand.u32 %v552, 4294901760
    %727 = vmatmul.f32.gmra.mxu0 %v726
    %v728 = vpop.f32.mrf.mxu0
    %v729 = vadd.f32 %v703, %v728
    %730 = vdwg.mxu0
    %731 = vst [vmem:[#allocation2] sm:$0xff] %v725
    %732 = vst [vmem:[#allocation2 + $0x8] sm:$0xff] %v729
    // Predicated region
    $region26: #{tpu_custom_call.1} parent=1 // pred_check
      _
    $region27: #{tpu_custom_call.1} parent=1 // pred_check_branch
      %734 = sbr.rel (0) target = $region29
    $region28: #{tpu_custom_call.1} parent=1 // pred_region
      %736 = vsyncadd [#allocation3], 0
      %s737 = sshll.u32 [#allocation2], 4
      %s738 = int_to_ptr.vmem [resolvable:$true] %s737
      %s739 = sshll.u32 %s6, 4
      %s740 = int_to_ptr.hbm [resolvable:$true] %s739
      %745 = dma.vmem_to_hbm [thread:$0]  %s738, 256, %s740, [#allocation3], 128, 128, 8
    $region29: #{tpu_custom_call.1} parent=1 // pred_fallthru
      _
    // Predicated region
    $region30: #{tpu_custom_call.1} parent=1 // pred_check
      _
    $region31: #{tpu_custom_call.1} parent=1 // pred_check_branch
      %747 = sbr.rel (0) target = $region33
    $region32: #{tpu_custom_call.1} parent=1 // pred_region
      %749 = vsyncadd [#allocation5], 0
      %s751 = sshll.u32 [#allocation4], 4
      %s752 = int_to_ptr.vmem [resolvable:$true] %s751
      %s753 = sshll.u32 %s7, 4
      %s754 = int_to_ptr.hbm [resolvable:$true] %s753
      %756 = dma.vmem_to_hbm [thread:$0]  %s752, 16, %s754, [#allocation5]
    $region33: #{tpu_custom_call.1} parent=1 // pred_fallthru
      _
    // Predicated region
    $region34: #{tpu_custom_call.1} parent=1 // pred_check
      _
    $region35: #{tpu_custom_call.1} parent=1 // pred_check_branch
      %758 = sbr.rel (0) target = $region37
    $region36: #{tpu_custom_call.1} parent=1 // pred_region
      %760 = dma.done [#allocation3], 256
    $region37: #{tpu_custom_call.1} parent=1 // pred_fallthru
      _
    // Predicated region
    $region38: #{tpu_custom_call.1} parent=1 // pred_check
      _
    $region39: #{tpu_custom_call.1} parent=1 // pred_check_branch
      %762 = sbr.rel (0) target = $region41
    $region40: #{tpu_custom_call.1} parent=1 // pred_region
      %764 = dma.done [#allocation5], 16
    $region41: #{tpu_custom_call.1} parent=1 // pred_fallthru
      _
    %765 = vsyncpa [#allocation3], 1
    %766 = vsyncpa [#allocation5], 1

</llo_original>
